<compile_context>
chip_gen: v7x
topology: tpu7x:2x2x1
jax: 0.10.0
libtpu: 0.0.40
codegen_flags: <defaults>
</compile_context>

<pallas_src>
import functools

import jax
import jax.numpy as jnp
from jax import lax
from jax.experimental import pallas as pl
from jax.experimental.pallas import tpu as pltpu


def bottleneck_kernel(x_ref, w1_ref, b1_ref, w2_ref, b2_ref, w3_ref, b3_ref,
                      mask_ref, o_ref, *, W):
    """One batch-block of the Bottleneck forward.

    Lane-dense layouts (channels on sublanes, flat (image, y, x) on lanes):
      x_ref, o_ref : (Cin, Sblk) f32, Sblk = B_blk * H * W
      w1_ref       : (Ppad, Cin)     conv1 weights, BN1 scale folded in
      w2_ref       : (Ppad, 9*Ppad)  conv2 weights, BN2 scale folded, tap-major cols
      w3_ref       : (Cin, Ppad)     conv3 weights, BN3 scale folded in
      b*_ref       : per-channel bias columns (f32)
      mask_ref     : (9, Sblk) {0,1} f32 SAME-padding / image-boundary masks
    """
    x = x_ref[...]                                        # (Cin, Sblk) f32
    Sblk = x.shape[1]
    mm_dtype = w1_ref.dtype                               # f32 or bf16 MXU operands

    # ---- conv1 (1x1) + bn1 (scale folded) + relu -----------------------------
    h1 = jnp.dot(w1_ref[...], x.astype(mm_dtype),
                 preferred_element_type=jnp.float32)
    h1 = jnp.maximum(h1 + b1_ref[...], 0.0)               # (Ppad, Sblk) f32

    # ---- conv2 (3x3, stride=1, SAME) + bn2 + relu ----------------------------
    # Each tap is a lane rotation of h1 (XLU) whose out-of-image / cross-image
    # lanes are killed by a precomputed mask; the nine masked windows are
    # stacked along sublanes and fed to the MXU as a single K = 9*Ppad matmul.
    parts = []
    t = 0
    for dy in (-1, 0, 1):
        for dx in (-1, 0, 1):
            off = dy * W + dx
            if off == 0:
                win = h1                                   # centre tap: mask == 1
            else:
                win = pltpu.roll(h1, shift=(-off) % Sblk, axis=1)
                win = win * mask_ref[t:t + 1, :]           # (1, Sblk) broadcast, f32
            parts.append(win)
            t += 1
    stacked = jnp.concatenate(parts, axis=0).astype(mm_dtype)   # (9*Ppad, Sblk)
    h2 = jnp.dot(w2_ref[...], stacked, preferred_element_type=jnp.float32)
    h2 = jnp.maximum(h2 + b2_ref[...], 0.0)                # (Ppad, Sblk) f32

    # ---- conv3 (1x1) + bn3 (scale folded) ------------------------------------
    h3 = jnp.dot(w3_ref[...], h2.astype(mm_dtype),
                 preferred_element_type=jnp.float32)
    h3 = h3 + b3_ref[...]                                  # (Cin, Sblk)

    # ---- residual add (identity: stride=1, downsample=None) + relu -----------
    o_ref[...] = jnp.maximum(h3 + x, 0.0)


def fold_bn(gamma, beta, mean, var, eps=1e-5):
    scale = gamma / jnp.sqrt(var + eps)
    bias = beta - mean * scale
    return scale, bias                                     # (C,), (C,)


def prepare_params(w1, s1, b1, w2, s2, b2, w3, s3, b3, *, mm_dtype=jnp.float32):
    """Fold BN scales into conv weights and lay everything out for the kernel."""
    Cin, P = w1.shape
    assert w3.shape == (P, Cin), "identity residual needs inplanes == 4*planes"
    Ppad = ((P + 7) // 8) * 8                              # fill the 8 sublanes

    w1s = jnp.zeros((Ppad, Cin), jnp.float32).at[:P, :].set(w1.T * s1[:, None])

    w2_sc = w2 * s2[None, None, None, :]                   # scale output channels
    w2_oti = jnp.transpose(w2_sc.reshape(9, P, P), (2, 0, 1))   # (out, tap, in)
    w2s = (jnp.zeros((Ppad, 9, Ppad), jnp.float32)
           .at[:P, :, :P].set(w2_oti)).reshape(Ppad, 9 * Ppad)

    w3s = jnp.zeros((Cin, Ppad), jnp.float32).at[:, :P].set(w3.T * s3[:, None])

    b1c = jnp.zeros((Ppad, 1), jnp.float32).at[:P, 0].set(b1)
    b2c = jnp.zeros((Ppad, 1), jnp.float32).at[:P, 0].set(b2)
    b3c = b3.reshape(Cin, 1).astype(jnp.float32)

    return (w1s.astype(mm_dtype), b1c, w2s.astype(mm_dtype), b2c,
            w3s.astype(mm_dtype), b3c)


def build_tap_masks(H, W, B_blk):
    """Static {0,1} SAME-padding masks per tap, tiled over the batch block."""
    S = H * W
    pos = jnp.arange(S, dtype=jnp.int32)
    xx = pos % W
    yy = pos // W
    y_lo = (yy > 0).astype(jnp.float32)
    y_hi = (yy < H - 1).astype(jnp.float32)
    x_lo = (xx > 0).astype(jnp.float32)
    x_hi = (xx < W - 1).astype(jnp.float32)
    ones = jnp.ones((S,), jnp.float32)
    rows = []
    for dy in (-1, 0, 1):
        for dx in (-1, 0, 1):
            m = ones
            if dy == -1:
                m = m * y_lo
            if dy == 1:
                m = m * y_hi
            if dx == -1:
                m = m * x_lo
            if dx == 1:
                m = m * x_hi
            rows.append(m)
    mask = jnp.stack(rows, axis=0)                          # (9, S)
    return jnp.tile(mask, (1, B_blk))                       # (9, B_blk*S)


def _pick_batch_block(n, s, cin, *, target_block_bytes=2 << 20):
    """Largest per-step batch block keeping >=2 grid steps (v7x megacore +
    pipelining), lane-aligned blocks (Sblk % 128 == 0) and a bounded block."""
    best = n                      # fallback: one full block (no 128 constraint)
    for b in range(1, n):         # excludes b == n => grid >= 2 for candidates
        if n % b:
            continue
        sblk = b * s
        if sblk % 128 != 0:
            continue
        if cin * sblk * 4 > target_block_bytes:
            continue
        best = b
    return best


def bottleneck_pallas(x_cf, params, *, N, H, W):
    """Bottleneck forward on a lane-dense (Cin, N*H*W) activation tensor."""
    w1s, b1c, w2s, b2c, w3s, b3c = params
    Cin, total = x_cf.shape
    S = H * W
    assert total == N * S
    Ppad = w1s.shape[0]
    assert Cin == w3s.shape[0], "identity residual needs matching channel count"

    B_blk = _pick_batch_block(N, S, Cin)
    Sblk = B_blk * S
    grid_len = N // B_blk
    masks = build_tap_masks(H, W, B_blk)

    def nbytes(a):
        return a.size * a.dtype.itemsize

    act_block_bytes = Cin * Sblk * 4
    param_bytes = sum(nbytes(a) for a in (w1s, b1c, w2s, b2c, w3s, b3c, masks))
    interm_bytes = (Ppad + 9 * Ppad + Ppad + Cin) * Sblk * 4
    vmem_need = 2 * 2 * act_block_bytes + 2 * param_bytes + interm_bytes
    vmem_limit = int(min(max(2 * vmem_need, 4 << 20), 48 << 20))   # v7x-safe cap

    flops = 2 * N * S * (Cin * Ppad + 9 * Ppad * Ppad + Ppad * Cin)
    bytes_accessed = 2 * N * S * Cin * 4 + param_bytes

    full = lambda a: pl.BlockSpec(a.shape, lambda i: (0,) * a.ndim)
    act_spec = pl.BlockSpec((Cin, Sblk), lambda i: (0, i))

    out = pl.pallas_call(
        functools.partial(bottleneck_kernel, W=W),
        out_shape=jax.ShapeDtypeStruct((Cin, N * S), jnp.float32),
        grid_spec=pltpu.PrefetchScalarGridSpec(
            num_scalar_prefetch=0,
            grid=(grid_len,),
            in_specs=[act_spec,
                      full(w1s), full(b1c), full(w2s), full(b2c),
                      full(w3s), full(b3c), full(masks)],
            out_specs=act_spec,
        ),
        compiler_params=pltpu.CompilerParams(
            dimension_semantics=("parallel",),      # batch blocks independent
            vmem_limit_bytes=vmem_limit),
        cost_estimate=pl.CostEstimate(
            flops=int(flops), transcendentals=0,
            bytes_accessed=int(bytes_accessed)),
    )(x_cf, w1s, b1c, w2s, b2c, w3s, b3c, masks)
    return out


def ref_forward(x_nhwc, w1, s1, b1, w2, s2, b2, w3, s3, b3):
    h1 = jnp.maximum(jnp.einsum('nhwc,cp->nhwp', x_nhwc, w1) * s1 + b1, 0.0)
    h2 = lax.conv_general_dilated(
        h1, w2, window_strides=(1, 1), padding='SAME',
        dimension_numbers=('NHWC', 'HWIO', 'NHWC'))
    h2 = jnp.maximum(h2 * s2 + b2, 0.0)
    h3 = jnp.einsum('nhwp,pq->nhwq', h2, w3) * s3 + b3
    return jnp.maximum(h3 + x_nhwc, 0.0)


if __name__ == "__main__":
    # Shapes consistent with Bottleneck(inplanes=16, planes=4) and the identity
    # residual path (downsample=None requires inplanes == 4*planes).
    N, H, W = 2, 16, 16
    planes = 4
    inplanes = planes * 4          # expansion = 4

    key = jax.random.PRNGKey(0)
    ks = jax.random.split(key, 16)

    # Input in PyTorch NCHW convention, transposed to NHWC for the reference.
    x_nchw = jax.random.normal(ks[0], (N, inplanes, H, W), jnp.float32)
    x_nhwc = jnp.transpose(x_nchw, (0, 2, 3, 1))

    # Conv weights (channel-last matmul / HWIO layouts).
    w1 = 0.1 * jax.random.normal(ks[1], (inplanes, planes), jnp.float32)
    w2 = 0.1 * jax.random.normal(ks[2], (3, 3, planes, planes), jnp.float32)
    w3 = 0.1 * jax.random.normal(ks[3], (planes, inplanes), jnp.float32)

    # BatchNorm params (inference mode, folded to per-channel scale/bias).
    def bn_params(kg, kb, km, kv, c):
        gamma = 1.0 + 0.1 * jax.random.normal(kg, (c,), jnp.float32)
        beta = 0.1 * jax.random.normal(kb, (c,), jnp.float32)
        mean = 0.1 * jax.random.normal(km, (c,), jnp.float32)
        var = jnp.abs(1.0 + 0.1 * jax.random.normal(kv, (c,), jnp.float32))
        return fold_bn(gamma, beta, mean, var)

    s1, b1 = bn_params(ks[4], ks[5], ks[6], ks[7], planes)
    s2, b2 = bn_params(ks[8], ks[9], ks[10], ks[11], planes)
    s3, b3 = bn_params(ks[12], ks[13], ks[14], ks[15], inplanes)

    # One-time layout conversion (chained Bottleneck blocks would stay in the
    # lane-dense (C, N*H*W) layout across calls and never pay this transpose).
    x_cf = x_nhwc.reshape(N * H * W, inplanes).T

    ref = ref_forward(x_nhwc, w1, s1, b1, w2, s2, b2, w3, s3, b3)

    # f32 MXU operands: exact-path check against the reference.
    params_f32 = prepare_params(w1, s1, b1, w2, s2, b2, w3, s3, b3)
    out_cf = jax.block_until_ready(
        bottleneck_pallas(x_cf, params_f32, N=N, H=H, W=W))
    out = out_cf.T.reshape(N, H, W, inplanes)
    err = float(jnp.max(jnp.abs(out - ref)))
    assert jnp.allclose(out, ref, atol=1e-3, rtol=1e-3), err

    # bf16 MXU operands (v6e/v7x fast path; f32 accumulation, f32 elementwise).
    params_bf16 = prepare_params(w1, s1, b1, w2, s2, b2, w3, s3, b3,
                                 mm_dtype=jnp.bfloat16)
    out_bf_cf = jax.block_until_ready(
        bottleneck_pallas(x_cf, params_bf16, N=N, H=H, W=W))
    out_bf = out_bf_cf.T.reshape(N, H, W, inplanes)
    err_bf = float(jnp.max(jnp.abs(out_bf - ref)))
    assert jnp.allclose(out_bf, ref, atol=1e-1, rtol=1e-1), err_bf

    print("KERNEL_OK")
</pallas_src>

<mosaic_0001>
module attributes {stable_mosaic.version = 11 : i64} {
  func.func @bottleneck_kernel(%arg0: i32, %arg1: memref<16x256xf32, #tpu.memory_space<vmem>>, %arg2: memref<8x16xf32, #tpu.memory_space<vmem>>, %arg3: memref<8x1xf32, #tpu.memory_space<vmem>>, %arg4: memref<8x72xf32, #tpu.memory_space<vmem>>, %arg5: memref<8x1xf32, #tpu.memory_space<vmem>>, %arg6: memref<16x8xf32, #tpu.memory_space<vmem>>, %arg7: memref<16x1xf32, #tpu.memory_space<vmem>>, %arg8: memref<9x256xf32, #tpu.memory_space<vmem>>, %arg9: memref<16x256xf32, #tpu.memory_space<vmem>>) attributes {dimension_semantics = [#tpu.dimension_semantics<parallel>], iteration_bounds = array<i64: 2>, scalar_prefetch = 0 : i64, scratch_operands = 0 : i64, tpu.core_type = #tpu.core_type<tc>, window_params = [{transform_indices = @transform_0, window_bounds = array<i64: 16, 256>}, {pipeline_mode = #tpu.pipeline_mode<synchronous>, transform_indices = @transform_1, window_bounds = array<i64: 8, 16>}, {pipeline_mode = #tpu.pipeline_mode<synchronous>, transform_indices = @transform_2, window_bounds = array<i64: 8, 1>}, {pipeline_mode = #tpu.pipeline_mode<synchronous>, transform_indices = @transform_3, window_bounds = array<i64: 8, 72>}, {pipeline_mode = #tpu.pipeline_mode<synchronous>, transform_indices = @transform_4, window_bounds = array<i64: 8, 1>}, {pipeline_mode = #tpu.pipeline_mode<synchronous>, transform_indices = @transform_5, window_bounds = array<i64: 16, 8>}, {pipeline_mode = #tpu.pipeline_mode<synchronous>, transform_indices = @transform_6, window_bounds = array<i64: 16, 1>}, {pipeline_mode = #tpu.pipeline_mode<synchronous>, transform_indices = @transform_7, window_bounds = array<i64: 9, 256>}, {transform_indices = @transform_8, window_bounds = array<i64: 16, 256>}]} {
    %c0 = arith.constant 0 : index
    %c0_0 = arith.constant 0 : index
    %0 = vector.load %arg1[%c0, %c0_0] : memref<16x256xf32, #tpu.memory_space<vmem>>, vector<16x256xf32>
    %c0_1 = arith.constant 0 : index
    %c0_2 = arith.constant 0 : index
    %1 = vector.load %arg2[%c0_1, %c0_2] : memref<8x16xf32, #tpu.memory_space<vmem>>, vector<8x16xf32>
    %cst = arith.constant dense<0.000000e+00> : vector<8x256xf32>
    %2 = tpu.matmul %1, %0, %cst {dimension_numbers = #tpu.dot_dimension_numbers<[1], [0], [0], [1], [0, 0, 1, 1], [], []>} : vector<8x16xf32>, vector<16x256xf32>, vector<8x256xf32> -> vector<8x256xf32>
    %c0_3 = arith.constant 0 : index
    %c0_4 = arith.constant 0 : index
    %3 = vector.load %arg3[%c0_3, %c0_4] : memref<8x1xf32, #tpu.memory_space<vmem>>, vector<8x1xf32>
    %4 = vector.broadcast %3 : vector<8x1xf32> to vector<8x256xf32>
    %5 = arith.addf %2, %4 : vector<8x256xf32>
    %cst_5 = arith.constant 0.000000e+00 : f32
    %6 = vector.broadcast %cst_5 : f32 to vector<8x256xf32>
    %7 = arith.maximumf %5, %6 : vector<8x256xf32>
    %c17_i32 = arith.constant 17 : i32
    %8 = tpu.dynamic_rotate %7 by %c17_i32 dim 1 : vector<8x256xf32>, i32 -> vector<8x256xf32>
    %c0_6 = arith.constant 0 : index
    %c0_7 = arith.constant 0 : index
    %9 = vector.load %arg8[%c0_6, %c0_7] : memref<9x256xf32, #tpu.memory_space<vmem>>, vector<1x256xf32>
    %10 = vector.broadcast %9 : vector<1x256xf32> to vector<8x256xf32>
    %11 = arith.mulf %8, %10 : vector<8x256xf32>
    %c16_i32 = arith.constant 16 : i32
    %12 = tpu.dynamic_rotate %7 by %c16_i32 dim 1 : vector<8x256xf32>, i32 -> vector<8x256xf32>
    %c1 = arith.constant 1 : index
    %c0_8 = arith.constant 0 : index
    %13 = vector.load %arg8[%c1, %c0_8] : memref<9x256xf32, #tpu.memory_space<vmem>>, vector<1x256xf32>
    %14 = vector.broadcast %13 : vector<1x256xf32> to vector<8x256xf32>
    %15 = arith.mulf %12, %14 : vector<8x256xf32>
    %c15_i32 = arith.constant 15 : i32
    %16 = tpu.dynamic_rotate %7 by %c15_i32 dim 1 : vector<8x256xf32>, i32 -> vector<8x256xf32>
    %c2 = arith.constant 2 : index
    %c0_9 = arith.constant 0 : index
    %17 = vector.load %arg8[%c2, %c0_9] : memref<9x256xf32, #tpu.memory_space<vmem>>, vector<1x256xf32>
    %18 = vector.broadcast %17 : vector<1x256xf32> to vector<8x256xf32>
    %19 = arith.mulf %16, %18 : vector<8x256xf32>
    %c1_i32 = arith.constant 1 : i32
    %20 = tpu.dynamic_rotate %7 by %c1_i32 dim 1 : vector<8x256xf32>, i32 -> vector<8x256xf32>
    %c3 = arith.constant 3 : index
    %c0_10 = arith.constant 0 : index
    %21 = vector.load %arg8[%c3, %c0_10] : memref<9x256xf32, #tpu.memory_space<vmem>>, vector<1x256xf32>
    %22 = vector.broadcast %21 : vector<1x256xf32> to vector<8x256xf32>
    %23 = arith.mulf %20, %22 : vector<8x256xf32>
    %c255_i32 = arith.constant 255 : i32
    %24 = tpu.dynamic_rotate %7 by %c255_i32 dim 1 : vector<8x256xf32>, i32 -> vector<8x256xf32>
    %c5 = arith.constant 5 : index
    %c0_11 = arith.constant 0 : index
    %25 = vector.load %arg8[%c5, %c0_11] : memref<9x256xf32, #tpu.memory_space<vmem>>, vector<1x256xf32>
    %26 = vector.broadcast %25 : vector<1x256xf32> to vector<8x256xf32>
    %27 = arith.mulf %24, %26 : vector<8x256xf32>
    %c241_i32 = arith.constant 241 : i32
    %28 = tpu.dynamic_rotate %7 by %c241_i32 dim 1 : vector<8x256xf32>, i32 -> vector<8x256xf32>
    %c6 = arith.constant 6 : index
    %c0_12 = arith.constant 0 : index
    %29 = vector.load %arg8[%c6, %c0_12] : memref<9x256xf32, #tpu.memory_space<vmem>>, vector<1x256xf32>
    %30 = vector.broadcast %29 : vector<1x256xf32> to vector<8x256xf32>
    %31 = arith.mulf %28, %30 : vector<8x256xf32>
    %c240_i32 = arith.constant 240 : i32
    %32 = tpu.dynamic_rotate %7 by %c240_i32 dim 1 : vector<8x256xf32>, i32 -> vector<8x256xf32>
    %c7 = arith.constant 7 : index
    %c0_13 = arith.constant 0 : index
    %33 = vector.load %arg8[%c7, %c0_13] : memref<9x256xf32, #tpu.memory_space<vmem>>, vector<1x256xf32>
    %34 = vector.broadcast %33 : vector<1x256xf32> to vector<8x256xf32>
    %35 = arith.mulf %32, %34 : vector<8x256xf32>
    %c239_i32 = arith.constant 239 : i32
    %36 = tpu.dynamic_rotate %7 by %c239_i32 dim 1 : vector<8x256xf32>, i32 -> vector<8x256xf32>
    %c8 = arith.constant 8 : index
    %c0_14 = arith.constant 0 : index
    %37 = vector.load %arg8[%c8, %c0_14] : memref<9x256xf32, #tpu.memory_space<vmem>>, vector<1x256xf32>
    %38 = vector.broadcast %37 : vector<1x256xf32> to vector<8x256xf32>
    %39 = arith.mulf %36, %38 : vector<8x256xf32>
    %40 = tpu.concatenate %11, %15, %19, %23, %7, %27, %31, %35, %39 in 0 : vector<8x256xf32>, vector<8x256xf32>, vector<8x256xf32>, vector<8x256xf32>, vector<8x256xf32>, vector<8x256xf32>, vector<8x256xf32>, vector<8x256xf32>, vector<8x256xf32> -> vector<72x256xf32>
    %c0_15 = arith.constant 0 : index
    %c0_16 = arith.constant 0 : index
    %41 = vector.load %arg4[%c0_15, %c0_16] : memref<8x72xf32, #tpu.memory_space<vmem>>, vector<8x72xf32>
    %cst_17 = arith.constant dense<0.000000e+00> : vector<8x256xf32>
    %42 = tpu.matmul %41, %40, %cst_17 {dimension_numbers = #tpu.dot_dimension_numbers<[1], [0], [0], [1], [0, 0, 1, 1], [], []>} : vector<8x72xf32>, vector<72x256xf32>, vector<8x256xf32> -> vector<8x256xf32>
    %c0_18 = arith.constant 0 : index
    %c0_19 = arith.constant 0 : index
    %43 = vector.load %arg5[%c0_18, %c0_19] : memref<8x1xf32, #tpu.memory_space<vmem>>, vector<8x1xf32>
    %44 = vector.broadcast %43 : vector<8x1xf32> to vector<8x256xf32>
    %45 = arith.addf %42, %44 : vector<8x256xf32>
    %cst_20 = arith.constant 0.000000e+00 : f32
    %46 = vector.broadcast %cst_20 : f32 to vector<8x256xf32>
    %47 = arith.maximumf %45, %46 : vector<8x256xf32>
    %c0_21 = arith.constant 0 : index
    %c0_22 = arith.constant 0 : index
    %48 = vector.load %arg6[%c0_21, %c0_22] : memref<16x8xf32, #tpu.memory_space<vmem>>, vector<16x8xf32>
    %cst_23 = arith.constant dense<0.000000e+00> : vector<16x256xf32>
    %49 = tpu.matmul %48, %47, %cst_23 {dimension_numbers = #tpu.dot_dimension_numbers<[1], [0], [0], [1], [0, 0, 1, 1], [], []>} : vector<16x8xf32>, vector<8x256xf32>, vector<16x256xf32> -> vector<16x256xf32>
    %c0_24 = arith.constant 0 : index
    %c0_25 = arith.constant 0 : index
    %50 = vector.load %arg7[%c0_24, %c0_25] : memref<16x1xf32, #tpu.memory_space<vmem>>, vector<16x1xf32>
    %51 = vector.broadcast %50 : vector<16x1xf32> to vector<16x256xf32>
    %52 = arith.addf %49, %51 : vector<16x256xf32>
    %53 = arith.addf %52, %0 : vector<16x256xf32>
    %cst_26 = arith.constant 0.000000e+00 : f32
    %54 = vector.broadcast %cst_26 : f32 to vector<16x256xf32>
    %55 = arith.maximumf %53, %54 : vector<16x256xf32>
    %c0_27 = arith.constant 0 : index
    %c0_28 = arith.constant 0 : index
    %56 = vector.load %arg9[%c0_27, %c0_28] : memref<16x256xf32, #tpu.memory_space<vmem>>, vector<16x256xf32>
    tpu.vector_store %arg9[%c0_27, %c0_28], %55 {strides = array<i32>} : memref<16x256xf32, #tpu.memory_space<vmem>>, vector<16x256xf32>,
    return
  }
  func.func @transform_0(%arg0: i32) -> (i32, i32) {
    %c0_i32 = arith.constant 0 : i32
    %c0_i32_0 = arith.constant 0 : i32
    return %c0_i32, %arg0 : i32, i32
  }
  func.func @transform_1(%arg0: i32) -> (i32, i32) {
    %c0_i32 = arith.constant 0 : i32
    %c0_i32_0 = arith.constant 0 : i32
    %c0_i32_1 = arith.constant 0 : i32
    return %c0_i32, %c0_i32_0 : i32, i32
  }
  func.func @transform_2(%arg0: i32) -> (i32, i32) {
    %c0_i32 = arith.constant 0 : i32
    %c0_i32_0 = arith.constant 0 : i32
    %c0_i32_1 = arith.constant 0 : i32
    return %c0_i32, %c0_i32_0 : i32, i32
  }
  func.func @transform_3(%arg0: i32) -> (i32, i32) {
    %c0_i32 = arith.constant 0 : i32
    %c0_i32_0 = arith.constant 0 : i32
    %c0_i32_1 = arith.constant 0 : i32
    return %c0_i32, %c0_i32_0 : i32, i32
  }
  func.func @transform_4(%arg0: i32) -> (i32, i32) {
    %c0_i32 = arith.constant 0 : i32
    %c0_i32_0 = arith.constant 0 : i32
    %c0_i32_1 = arith.constant 0 : i32
    return %c0_i32, %c0_i32_0 : i32, i32
  }
  func.func @transform_5(%arg0: i32) -> (i32, i32) {
    %c0_i32 = arith.constant 0 : i32
    %c0_i32_0 = arith.constant 0 : i32
    %c0_i32_1 = arith.constant 0 : i32
    return %c0_i32, %c0_i32_0 : i32, i32
  }
  func.func @transform_6(%arg0: i32) -> (i32, i32) {
    %c0_i32 = arith.constant 0 : i32
    %c0_i32_0 = arith.constant 0 : i32
    %c0_i32_1 = arith.constant 0 : i32
    return %c0_i32, %c0_i32_0 : i32, i32
  }
  func.func @transform_7(%arg0: i32) -> (i32, i32) {
    %c0_i32 = arith.constant 0 : i32
    %c0_i32_0 = arith.constant 0 : i32
    %c0_i32_1 = arith.constant 0 : i32
    return %c0_i32, %c0_i32_0 : i32, i32
  }
  func.func @transform_8(%arg0: i32) -> (i32, i32) {
    %c0_i32 = arith.constant 0 : i32
    %c0_i32_0 = arith.constant 0 : i32
    return %c0_i32, %arg0 : i32, i32
  }
}

</mosaic_0001>

<llo_original>
// kernel: tpu_custom_call.1
$region0: #{tpu_custom_call.1}
  #allocation0 [shape = 'u32[]', space=smem, size = 0x4, offset = 0x4, fixed_abs, tag = 'smem constant byte address 0x4 - core index']
  #allocation1 [shape = 'u32[144,128]{1,0:T(1,128)}', space=vmem, size = 0x12000, scoped, tag = 'internal scratch']
  %s0 = inlined_call_operand.hbm [shape: f32[16,512], index: 0, kind: input, shape index: {}]
  %s1 = inlined_call_operand.vmem [shape: f32[8,16], index: 1, kind: input, shape index: {}]
  %s2 = inlined_call_operand.vmem [shape: f32[8,1], index: 2, kind: input, shape index: {}]
  %s3 = inlined_call_operand.vmem [shape: f32[8,72], index: 3, kind: input, shape index: {}]
  %s4 = inlined_call_operand.vmem [shape: f32[8,1], index: 4, kind: input, shape index: {}]
  %s5 = inlined_call_operand.vmem [shape: f32[16,8], index: 5, kind: input, shape index: {}]
  %s6 = inlined_call_operand.vmem [shape: f32[16,1], index: 6, kind: input, shape index: {}]
  %s7 = inlined_call_operand.vmem [shape: f32[9,256], index: 7, kind: input, shape index: {}]
  %s8 = inlined_call_operand.hbm [shape: f32[16,512], index: 8, kind: output, shape index: {}]
  %s9 = sld [smem:[#allocation0]]
  $region69: #{tpu_custom_call.1} parent=0
    _
  %s11 = ssub.s32 1, %s9
  %s12 = scalar_select 0, %s11, %s9
  $region1: #{tpu_custom_call.1} parent=0
    #allocation2 [shape = 'u8[32768]{0}', space=vmem, size = 0x8000, scoped, tag = 'input window, operand 0']
    #allocation3 [shape = 's32[2]{0}', space=sflag, size = 0x8, scoped, tag = 'scoped memory for tpu_custom_call.1']
    #allocation4 [shape = 's32[2]{0}', space=sflag, size = 0x8, scoped, tag = 'scoped memory for tpu_custom_call.1']
    #allocation5 [shape = 'u8[32768]{0}', space=vmem, size = 0x8000, scoped, tag = 'output window, operand 0']
    %13 = vsyncpa [#allocation3], 0
    %s14 = scalar_lea.sflag [#allocation3], 1
    %15 = vsyncpa %s14, 0
    %16 = vsyncpa [#allocation4], 0
    %s17 = scalar_lea.sflag [#allocation4], 1
    %18 = vsyncpa %s17, 0
    loop: start=0, step=1, limit=4
    $region2: #{tpu_custom_call.1} parent=1 // loop_pre_header
      _
    $region3: #{tpu_custom_call.1} parent=1 // loop_header
      %s20 = sphi 0, %s24
      %p21 = scmp.ge.s32.totalorder %s20, 4
      %s30 = sphi 0, %s32
      %s33 = sphi 0, %s30
      %s34 = sphi 0, %s33
      %s50 = sphi 0, %s34
      %s54 = sphi 0, %s54
      %s56 = sphi 0, %s54
      %s57 = sphi 0, %s56
      %s71 = sphi 0, %s57
      %s75 = sphi 0, %s75
      %s77 = sphi 0, %s75
      %s78 = sphi 0, %s77
      %s92 = sphi 0, %s78
      %s96 = sphi 0, %s96
      %s98 = sphi 0, %s96
      %s99 = sphi 0, %s98
      %s113 = sphi 0, %s99
      %s117 = sphi 0, %s117
      %s119 = sphi 0, %s117
      %s120 = sphi 0, %s119
      %s134 = sphi 0, %s120
      %s138 = sphi 0, %s138
      %s140 = sphi 0, %s138
      %s141 = sphi 0, %s140
      %s155 = sphi 0, %s141
      %s159 = sphi 0, %s159
      %s161 = sphi 0, %s159
      %s162 = sphi 0, %s161
      %s176 = sphi 0, %s162
      %s180 = sphi 0, %s180
      %s182 = sphi 0, %s180
      %s183 = sphi 0, %s182
      %s197 = sphi 0, %s183
      %s203 = sphi 0, %s205
      %s206 = sphi 0, %s203
      %s207 = sphi 0, %s206
      %s223 = sphi 0, %s207
    $region4: #{tpu_custom_call.1} parent=1 // loop_header_branch
      %23 = sbr.rel (%p21) target = $region8
    $region5: #{tpu_custom_call.1} parent=1 // loop_body
      %s25 = ssub.s32 %s20, 1
      %s26 = ssub.s32 %s20, 2
      %s27 = sadd.s32 %s20, 1
      %s28 = ssub.s32 %s20, %s27
      %p29 = scmp.eq.s32.totalorder %s28, 0
      %s31 = sadd.s32 %s30, 1
      %s32 = scalar_select %p29, %s30, %s31
      %p35 = pneg %p29
      %p36 = scmp.eq.s32.totalorder %s20, 1
      %p37 = por %p35, %p36
      %p38 = scmp.ne.s32.totalorder %s30, %s33
      %p39 = scmp.eq.s32.totalorder %s20, 0
      %p40 = por %p38, %p39
      %p41 = scmp.ne.s32.totalorder %s30, %s33
      %p42 = scmp.eq.s32.totalorder %s25, 1
      %p43 = por %p41, %p42
      %p44 = scmp.ne.s32.totalorder %s33, %s34
      %p45 = scmp.eq.s32.totalorder %s25, 0
      %p46 = por %p44, %p45
      %p47 = scmp.ne.s32.totalorder %s33, %s34
      %p48 = scmp.eq.s32.totalorder %s26, 1
      %p49 = por %p47, %p48
      %p51 = scmp.ne.s32.totalorder %s34, %s50
      %p52 = scmp.eq.s32.totalorder %s26, 0
      %p53 = por %p51, %p52
      %s55 = sadd.s32 %s54, 1
      %p58 = scmp.eq.s32.totalorder %s20, 1
      %p59 = scmp.ne.s32.totalorder %s54, %s56
      %p60 = scmp.eq.s32.totalorder %s20, 0
      %p61 = por %p59, %p60
      %p62 = scmp.ne.s32.totalorder %s54, %s56
      %p63 = scmp.eq.s32.totalorder %s25, 1
      %p64 = por %p62, %p63
      %p65 = scmp.ne.s32.totalorder %s56, %s57
      %p66 = scmp.eq.s32.totalorder %s25, 0
      %p67 = por %p65, %p66
      %p68 = scmp.ne.s32.totalorder %s56, %s57
      %p69 = scmp.eq.s32.totalorder %s26, 1
      %p70 = por %p68, %p69
      %p72 = scmp.ne.s32.totalorder %s57, %s71
      %p73 = scmp.eq.s32.totalorder %s26, 0
      %p74 = por %p72, %p73
      %s76 = sadd.s32 %s75, 1
      %p79 = scmp.eq.s32.totalorder %s20, 1
      %p80 = scmp.ne.s32.totalorder %s75, %s77
      %p81 = scmp.eq.s32.totalorder %s20, 0
      %p82 = por %p80, %p81
      %p83 = scmp.ne.s32.totalorder %s75, %s77
      %p84 = scmp.eq.s32.totalorder %s25, 1
      %p85 = por %p83, %p84
      %p86 = scmp.ne.s32.totalorder %s77, %s78
      %p87 = scmp.eq.s32.totalorder %s25, 0
      %p88 = por %p86, %p87
      %p89 = scmp.ne.s32.totalorder %s77, %s78
      %p90 = scmp.eq.s32.totalorder %s26, 1
      %p91 = por %p89, %p90
      %p93 = scmp.ne.s32.totalorder %s78, %s92
      %p94 = scmp.eq.s32.totalorder %s26, 0
      %p95 = por %p93, %p94
      %s97 = sadd.s32 %s96, 1
      %p100 = scmp.eq.s32.totalorder %s20, 1
      %p101 = scmp.ne.s32.totalorder %s96, %s98
      %p102 = scmp.eq.s32.totalorder %s20, 0
      %p103 = por %p101, %p102
      %p104 = scmp.ne.s32.totalorder %s96, %s98
      %p105 = scmp.eq.s32.totalorder %s25, 1
      %p106 = por %p104, %p105
      %p107 = scmp.ne.s32.totalorder %s98, %s99
      %p108 = scmp.eq.s32.totalorder %s25, 0
      %p109 = por %p107, %p108
      %p110 = scmp.ne.s32.totalorder %s98, %s99
      %p111 = scmp.eq.s32.totalorder %s26, 1
      %p112 = por %p110, %p111
      %p114 = scmp.ne.s32.totalorder %s99, %s113
      %p115 = scmp.eq.s32.totalorder %s26, 0
      %p116 = por %p114, %p115
      %s118 = sadd.s32 %s117, 1
      %p121 = scmp.eq.s32.totalorder %s20, 1
      %p122 = scmp.ne.s32.totalorder %s117, %s119
      %p123 = scmp.eq.s32.totalorder %s20, 0
      %p124 = por %p122, %p123
      %p125 = scmp.ne.s32.totalorder %s117, %s119
      %p126 = scmp.eq.s32.totalorder %s25, 1
      %p127 = por %p125, %p126
      %p128 = scmp.ne.s32.totalorder %s119, %s120
      %p129 = scmp.eq.s32.totalorder %s25, 0
      %p130 = por %p128, %p129
      %p131 = scmp.ne.s32.totalorder %s119, %s120
      %p132 = scmp.eq.s32.totalorder %s26, 1
      %p133 = por %p131, %p132
      %p135 = scmp.ne.s32.totalorder %s120, %s134
      %p136 = scmp.eq.s32.totalorder %s26, 0
      %p137 = por %p135, %p136
      %s139 = sadd.s32 %s138, 1
      %p142 = scmp.eq.s32.totalorder %s20, 1
      %p143 = scmp.ne.s32.totalorder %s138, %s140
      %p144 = scmp.eq.s32.totalorder %s20, 0
      %p145 = por %p143, %p144
      %p146 = scmp.ne.s32.totalorder %s138, %s140
      %p147 = scmp.eq.s32.totalorder %s25, 1
      %p148 = por %p146, %p147
      %p149 = scmp.ne.s32.totalorder %s140, %s141
      %p150 = scmp.eq.s32.totalorder %s25, 0
      %p151 = por %p149, %p150
      %p152 = scmp.ne.s32.totalorder %s140, %s141
      %p153 = scmp.eq.s32.totalorder %s26, 1
      %p154 = por %p152, %p153
      %p156 = scmp.ne.s32.totalorder %s141, %s155
      %p157 = scmp.eq.s32.totalorder %s26, 0
      %p158 = por %p156, %p157
      %s160 = sadd.s32 %s159, 1
      %p163 = scmp.eq.s32.totalorder %s20, 1
      %p164 = scmp.ne.s32.totalorder %s159, %s161
      %p165 = scmp.eq.s32.totalorder %s20, 0
      %p166 = por %p164, %p165
      %p167 = scmp.ne.s32.totalorder %s159, %s161
      %p168 = scmp.eq.s32.totalorder %s25, 1
      %p169 = por %p167, %p168
      %p170 = scmp.ne.s32.totalorder %s161, %s162
      %p171 = scmp.eq.s32.totalorder %s25, 0
      %p172 = por %p170, %p171
      %p173 = scmp.ne.s32.totalorder %s161, %s162
      %p174 = scmp.eq.s32.totalorder %s26, 1
      %p175 = por %p173, %p174
      %p177 = scmp.ne.s32.totalorder %s162, %s176
      %p178 = scmp.eq.s32.totalorder %s26, 0
      %p179 = por %p177, %p178
      %s181 = sadd.s32 %s180, 1
      %p184 = scmp.eq.s32.totalorder %s20, 1
      %p185 = scmp.ne.s32.totalorder %s180, %s182
      %p186 = scmp.eq.s32.totalorder %s20, 0
      %p187 = por %p185, %p186
      %p188 = scmp.ne.s32.totalorder %s180, %s182
      %p189 = scmp.eq.s32.totalorder %s25, 1
      %p190 = por %p188, %p189
      %p191 = scmp.ne.s32.totalorder %s182, %s183
      %p192 = scmp.eq.s32.totalorder %s25, 0
      %p193 = por %p191, %p192
      %p194 = scmp.ne.s32.totalorder %s182, %s183
      %p195 = scmp.eq.s32.totalorder %s26, 1
      %p196 = por %p194, %p195
      %p198 = scmp.ne.s32.totalorder %s183, %s197
      %p199 = scmp.eq.s32.totalorder %s26, 0
      %p200 = por %p198, %p199
      %s201 = ssub.s32 %s20, %s27
      %p202 = scmp.eq.s32.totalorder %s201, 0
      %s204 = sadd.s32 %s203, 1
      %s205 = scalar_select %p202, %s203, %s204
      %p208 = pneg %p202
      %p209 = scmp.eq.s32.totalorder %s20, 1
      %p210 = por %p208, %p209
      %p211 = scmp.ne.s32.totalorder %s203, %s206
      %p212 = scmp.eq.s32.totalorder %s20, 0
      %p213 = por %p211, %p212
      %p214 = scmp.ne.s32.totalorder %s203, %s206
      %p215 = scmp.eq.s32.totalorder %s25, 1
      %p216 = por %p214, %p215
      %p217 = scmp.ne.s32.totalorder %s206, %s207
      %p218 = scmp.eq.s32.totalorder %s25, 0
      %p219 = por %p217, %p218
      %p220 = scmp.ne.s32.totalorder %s206, %s207
      %p221 = scmp.eq.s32.totalorder %s26, 1
      %p222 = por %p220, %p221
      %p224 = scmp.ne.s32.totalorder %s207, %s223
      %p225 = scmp.eq.s32.totalorder %s26, 0
      %p226 = por %p224, %p225
      %p227 = scmp.le.s32.totalorder 1, %s20
      %p228 = scmp.lt.s32.totalorder %s20, 3
      %p229 = pnand %p227, %p228
      %p230 = pneg %p229
      // Predicated region
      $region9: #{tpu_custom_call.1} parent=5 // pred_check
        _
      $region10: #{tpu_custom_call.1} parent=5 // pred_check_branch
        %232 = sbr.rel (%p229) target = $region12
      $region11: #{tpu_custom_call.1} parent=5 // pred_region
        %s233 = ssub.s32 %s20, 1
        // Predicated region
        $region13: #{tpu_custom_call.1} parent=11 // pred_check
          %p234 = pneg %p67
        $region14: #{tpu_custom_call.1} parent=11 // pred_check_branch
          %236 = sbr.rel (%p234) target = $region16
        $region15: #{tpu_custom_call.1} parent=11 // pred_region
          _
        $region16: #{tpu_custom_call.1} parent=11 // pred_fallthru
          _
        // Predicated region
        $region17: #{tpu_custom_call.1} parent=11 // pred_check
          %p237 = pneg %p88
        $region18: #{tpu_custom_call.1} parent=11 // pred_check_branch
          %239 = sbr.rel (%p237) target = $region20
        $region19: #{tpu_custom_call.1} parent=11 // pred_region
          _
        $region20: #{tpu_custom_call.1} parent=11 // pred_fallthru
          _
        // Predicated region
        $region21: #{tpu_custom_call.1} parent=11 // pred_check
          %p240 = pneg %p109
        $region22: #{tpu_custom_call.1} parent=11 // pred_check_branch
          %242 = sbr.rel (%p240) target = $region24
        $region23: #{tpu_custom_call.1} parent=11 // pred_region
          _
        $region24: #{tpu_custom_call.1} parent=11 // pred_fallthru
          _
        // Predicated region
        $region25: #{tpu_custom_call.1} parent=11 // pred_check
          %p243 = pneg %p130
        $region26: #{tpu_custom_call.1} parent=11 // pred_check_branch
          %245 = sbr.rel (%p243) target = $region28
        $region27: #{tpu_custom_call.1} parent=11 // pred_region
          _
        $region28: #{tpu_custom_call.1} parent=11 // pred_fallthru
          _
        // Predicated region
        $region29: #{tpu_custom_call.1} parent=11 // pred_check
          %p246 = pneg %p151
        $region30: #{tpu_custom_call.1} parent=11 // pred_check_branch
          %248 = sbr.rel (%p246) target = $region32
        $region31: #{tpu_custom_call.1} parent=11 // pred_region
          _
        $region32: #{tpu_custom_call.1} parent=11 // pred_fallthru
          _
        // Predicated region
        $region33: #{tpu_custom_call.1} parent=11 // pred_check
          %p249 = pneg %p172
        $region34: #{tpu_custom_call.1} parent=11 // pred_check_branch
          %251 = sbr.rel (%p249) target = $region36
        $region35: #{tpu_custom_call.1} parent=11 // pred_region
          _
        $region36: #{tpu_custom_call.1} parent=11 // pred_fallthru
          _
        // Predicated region
        $region37: #{tpu_custom_call.1} parent=11 // pred_check
          %p252 = pneg %p193
        $region38: #{tpu_custom_call.1} parent=11 // pred_check_branch
          %254 = sbr.rel (%p252) target = $region40
        $region39: #{tpu_custom_call.1} parent=11 // pred_region
          _
        $region40: #{tpu_custom_call.1} parent=11 // pred_fallthru
          _
      $region12: #{tpu_custom_call.1} parent=5 // pred_fallthru
        _
      %p255 = scmp.lt.s32.totalorder %s20, 2
      // Predicated region
      $region41: #{tpu_custom_call.1} parent=5 // pred_check
        %p256 = pneg %p255
      $region42: #{tpu_custom_call.1} parent=5 // pred_check_branch
        %258 = sbr.rel (%p256) target = $region44
      $region43: #{tpu_custom_call.1} parent=5 // pred_region
        // Predicated region
        $region45: #{tpu_custom_call.1} parent=43 // pred_check
          %p259 = pneg %p40
        $region46: #{tpu_custom_call.1} parent=43 // pred_check_branch
          %261 = sbr.rel (%p259) target = $region48
        $region47: #{tpu_custom_call.1} parent=43 // pred_region
          %s262 = sand.u32 %s30, 1
          %s263 = scalar_lea.sflag [#allocation3], %s262
          %s264 = sand.u32 %s30, 1
          %s265 = smul.addr %s264, 32
          %s266 = scalar_lea.vmem [#allocation2], %s265
          %s267 = smul.u32 2, %s20
          %s269 = ssub.s32 512, 512
          %270 = vsyncadd %s263, %s269
          %s271 = smul.addr %s267, 128
          %s272 = scalar_lea.hbm %s0, %s271
          %s273 = sshll.u32 %s266, 4
          %s274 = int_to_ptr.vmem [resolvable:$true] %s273
          %279 = dma.hbm_to_vmem [thread:$0]  %s272, 512, %s274, %s263, 512, 256, 16
        $region48: #{tpu_custom_call.1} parent=43 // pred_fallthru
          _
      $region44: #{tpu_custom_call.1} parent=5 // pred_fallthru
        _
      %p280 = scmp.le.s32.totalorder 1, %s20
      %p281 = scmp.lt.s32.totalorder %s20, 3
      %p282 = pnand %p280, %p281
      %p283 = pneg %p282
      // Predicated region
      $region49: #{tpu_custom_call.1} parent=5 // pred_check
        _
      $region50: #{tpu_custom_call.1} parent=5 // pred_check_branch
        %285 = sbr.rel (%p282) target = $region52
      $region51: #{tpu_custom_call.1} parent=5 // pred_region
        %s286 = ssub.s32 %s20, 1
        %s287 = sand.u32 %s33, 1
        %s288 = scalar_lea.sflag [#allocation3], %s287
        %s289 = sand.u32 %s33, 1
        %s290 = smul.addr %s289, 32
        %s291 = scalar_lea.vmem [#allocation2], %s290
        // Predicated region
        $region53: #{tpu_custom_call.1} parent=51 // pred_check
          %p292 = pneg %p46
        $region54: #{tpu_custom_call.1} parent=51 // pred_check_branch
          %294 = sbr.rel (%p292) target = $region56
        $region55: #{tpu_custom_call.1} parent=51 // pred_region
          %295 = dma.done %s288, 512
        $region56: #{tpu_custom_call.1} parent=51 // pred_fallthru
          _
        %s296 = sand.u32 %s33, 1
        %s297 = scalar_lea.sflag [#allocation3], %s296
        %s298 = sand.u32 %s33, 1
        %s299 = smul.addr %s298, 32
        %s300 = scalar_lea.vmem [#allocation2], %s299
        %p301 = pneg %p46
        %p302 = pneg %p43
        %p303 = pneg %p67
        %p304 = pneg %p64
        %p305 = pneg %p88
        %p306 = pneg %p85
        %p307 = pneg %p109
        %p308 = pneg %p106
        %p309 = pneg %p130
        %p310 = pneg %p127
        %p311 = pneg %p151
        %p312 = pneg %p148
        %p313 = pneg %p172
        %p314 = pneg %p169
        %p315 = pneg %p193
        %p316 = pneg %p190
        %p317 = pneg %p219
        %p318 = pneg %p216
        %s319 = sand.u32 %s206, 1
        %s320 = scalar_lea.sflag [#allocation4], %s319
        %s321 = sand.u32 %s206, 1
        %s322 = smul.addr %s321, 32
        %s323 = scalar_lea.vmem [#allocation5], %s322
        %s324 = smul.u32 2, %s25
        %s325 = smul.u32 2, %s25
        %v326 = vld [vmem:[%s291] sm:$0xff]
        %v327 = vld [vmem:[%s291 + $0x8] sm:$0xff]
        %v328 = vld [vmem:[%s291 + $0x10] sm:$0xff]
        %v329 = vld [vmem:[%s291 + $0x18] sm:$0xff]
        %v330 = vld [vmem:[%s1] sm:$0xff]
        %v331 = vld [vmem:[%s2] sm:$0xff]
        %333 = vset.pattern.permute.xlu0 0
        %334 = vperm.xlu0 %333, %v331
        %v335 = vpop.permute.xlu0 %334
        %vm337 = vcmask 130048
        %v339 = vsel %vm337, %v330, 0
        %341 = vmatprep.subr.mxu0 %v327
        %342 = vmatpush1.msra.mxu0 %v326
        %343 = vmatprep.subr.mxu0 %v329
        %344 = vmatpush1.msra.mxu0 %v328
        %345 = vmatprep.subr.mxu0 0.0
        %346 = vmatpush1.msra.mxu0 0.0
        %347 = vmatprep.subr.mxu0 0.0
        %348 = vmatpush1.msra.mxu0 0.0
        %349 = vmatprep.subr.mxu0 0.0
        %350 = vmatpush1.msra.mxu0 0.0
        %351 = vmatprep.subr.mxu0 0.0
        %352 = vmatpush1.msra.mxu0 0.0
        %353 = vmatprep.subr.mxu0 0.0
        %354 = vmatpush1.msra.mxu0 0.0
        %355 = vmatprep.subr.mxu0 0.0
        %356 = vmatpush1.msra.mxu0 0.0
        %357 = vmatprep.subr.mxu0 0.0
        %358 = vmatpush1.msra.mxu0 0.0
        %359 = vmatprep.subr.mxu0 0.0
        %360 = vmatpush1.msra.mxu0 0.0
        %361 = vmatprep.subr.mxu0 0.0
        %362 = vmatpush1.msra.mxu0 0.0
        %363 = vmatprep.subr.mxu0 0.0
        %364 = vmatpush1.msra.mxu0 0.0
        %365 = vmatprep.subr.mxu0 0.0
        %366 = vmatpush1.msra.mxu0 0.0
        %367 = vmatprep.subr.mxu0 0.0
        %368 = vmatpush1.msra.mxu0 0.0
        %369 = vmatprep.subr.mxu0 0.0
        %370 = vmatpush1.msra.mxu0 0.0
        %371 = vmatprep.subr.mxu0 0.0
        %372 = vmatpush1.msra.mxu0 0.0
        %373 = vmatprep.subr.mxu0 0.0
        %374 = vmatpush1.msra.mxu0 0.0
        %375 = vmatprep.subr.mxu0 0.0
        %376 = vmatpush1.msra.mxu0 0.0
        %377 = vmatprep.subr.mxu0 0.0
        %378 = vmatpush1.msra.mxu0 0.0
        %379 = vmatprep.subr.mxu0 0.0
        %380 = vmatpush1.msra.mxu0 0.0
        %381 = vmatprep.subr.mxu0 0.0
        %382 = vmatpush1.msra.mxu0 0.0
        %383 = vmatprep.subr.mxu0 0.0
        %384 = vmatpush1.msra.mxu0 0.0
        %385 = vmatprep.subr.mxu0 0.0
        %386 = vmatpush1.msra.mxu0 0.0
        %387 = vmatprep.subr.mxu0 0.0
        %388 = vmatpush1.msra.mxu0 0.0
        %389 = vmatprep.subr.mxu0 0.0
        %390 = vmatpush1.msra.mxu0 0.0
        %391 = vmatprep.subr.mxu0 0.0
        %392 = vmatpush1.msra.mxu0 0.0
        %393 = vmatprep.subr.mxu0 0.0
        %394 = vmatpush1.msra.mxu0 0.0
        %395 = vmatprep.subr.mxu0 0.0
        %396 = vmatpush1.msra.mxu0 0.0
        %397 = vmatprep.subr.mxu0 0.0
        %398 = vmatpush1.msra.mxu0 0.0
        %399 = vmatprep.subr.mxu0 0.0
        %400 = vmatpush1.msra.mxu0 0.0
        %401 = vmatprep.subr.mxu0 0.0
        %402 = vmatpush1.msra.mxu0 0.0
        %403 = vmatprep.subr.mxu0 0.0
        %404 = vmatpush1.msra.mxu0 0.0
        %405 = vmatprep.mubr.f32.mxu0 0.0
        %406 = vmatmul.mubr.f32.gmra.mrb[0].mxu0 %v339
        %v407 = vpop.f32.mrb[0].mxu0
        %v408 = vadd.f32 %v335, %v407
        %v409 = vpop.f32.mrb[0].mxu0
        %v410 = vadd.f32 %v335, %v409
        %411 = vdwg.mxu0
        %v412 = vmax.f32 %v408, 0.0
        %v413 = vmax.f32 %v410, 0.0
        %414 = vrot.lane.b32.xlu0 %v412, 17
        %v415 = vpop.permute.xlu0 %414
        %416 = vrot.lane.b32.xlu0 %v413, 17
        %v417 = vpop.permute.xlu0 %416
        %v418 = vlaneseq
        %v419 = vand.u32 %v418, 127
        %vm420 = vcmp.lt.s32.totalorder %v419, 17
        %v421 = vsel %vm420, %v415, %v417
        %v422 = vsel %vm420, %v417, %v415
        %v423 = vld [vmem:[%s7] ss:$8 sm:$0x3]
        %v425 = vlaneseq
        %v426 = vshrl.u32 %v425, 7
        %v427 = vsub.s32 0, %v426
        %v428 = vrot.slane %v423, %v427
        %v429 = vlaneseq
        %v430 = vshrl.u32 %v429, 7
        %v431 = vsub.s32 1, %v430
        %v432 = vrot.slane %v423, %v431
        %v435 = vmul.f32 %v422, %v428
        %v436 = vmul.f32 %v421, %v432
        %437 = vrot.lane.b32.xlu0 %v412, 16
        %v438 = vpop.permute.xlu0 %437
        %439 = vrot.lane.b32.xlu0 %v413, 16
        %v440 = vpop.permute.xlu0 %439
        %vm441 = vcmp.lt.s32.totalorder %v419, 16
        %v442 = vsel %vm441, %v438, %v440
        %v443 = vsel %vm441, %v440, %v438
        %s444 = scalar_lea.vmem %s7, 1
        %v445 = vld [vmem:[%s444] ss:$8 sm:$0x3]
        %v447 = vlaneseq
        %v448 = vshrl.u32 %v447, 7
        %v449 = vsub.s32 0, %v448
        %v450 = vrot.slane %v445, %v449
        %v451 = vlaneseq
        %v452 = vshrl.u32 %v451, 7
        %v453 = vsub.s32 1, %v452
        %v454 = vrot.slane %v445, %v453
        %v457 = vmul.f32 %v443, %v450
        %v458 = vmul.f32 %v442, %v454
        %459 = vrot.lane.b32.xlu0 %v412, 15
        %v460 = vpop.permute.xlu0 %459
        %461 = vrot.lane.b32.xlu0 %v413, 15
        %v462 = vpop.permute.xlu0 %461
        %vm463 = vcmp.lt.s32.totalorder %v419, 15
        %v464 = vsel %vm463, %v460, %v462
        %v465 = vsel %vm463, %v462, %v460
        %s466 = scalar_lea.vmem %s7, 2
        %v467 = vld [vmem:[%s466] ss:$8 sm:$0x3]
        %v469 = vlaneseq
        %v470 = vshrl.u32 %v469, 7
        %v471 = vsub.s32 0, %v470
        %v472 = vrot.slane %v467, %v471
        %v473 = vlaneseq
        %v474 = vshrl.u32 %v473, 7
        %v475 = vsub.s32 1, %v474
        %v476 = vrot.slane %v467, %v475
        %v479 = vmul.f32 %v465, %v472
        %v480 = vmul.f32 %v464, %v476
        %481 = vrot.lane.b32.xlu0 %v412, 1
        %v482 = vpop.permute.xlu0 %481
        %483 = vrot.lane.b32.xlu0 %v413, 1
        %v484 = vpop.permute.xlu0 %483
        %vm485 = vcmp.lt.s32.totalorder %v419, 1
        %v486 = vsel %vm485, %v482, %v484
        %v487 = vsel %vm485, %v484, %v482
        %s488 = scalar_lea.vmem %s7, 3
        %v489 = vld [vmem:[%s488] ss:$8 sm:$0x3]
        %v491 = vlaneseq
        %v492 = vshrl.u32 %v491, 7
        %v493 = vsub.s32 0, %v492
        %v494 = vrot.slane %v489, %v493
        %v495 = vlaneseq
        %v496 = vshrl.u32 %v495, 7
        %v497 = vsub.s32 1, %v496
        %v498 = vrot.slane %v489, %v497
        %v501 = vmul.f32 %v487, %v494
        %v502 = vmul.f32 %v486, %v498
        %503 = vrot.lane.b32.xlu0 %v412, 127
        %v504 = vpop.permute.xlu0 %503
        %505 = vrot.lane.b32.xlu0 %v413, 127
        %v506 = vpop.permute.xlu0 %505
        %vm507 = vcmp.lt.s32.totalorder %v419, 127
        %v508 = vsel %vm507, %v504, %v506
        %v509 = vsel %vm507, %v506, %v504
        %s510 = scalar_lea.vmem %s7, 5
        %v511 = vld [vmem:[%s510] ss:$8 sm:$0x3]
        %v513 = vlaneseq
        %v514 = vshrl.u32 %v513, 7
        %v515 = vsub.s32 0, %v514
        %v516 = vrot.slane %v511, %v515
        %v517 = vlaneseq
        %v518 = vshrl.u32 %v517, 7
        %v519 = vsub.s32 1, %v518
        %v520 = vrot.slane %v511, %v519
        %v523 = vmul.f32 %v508, %v516
        %v524 = vmul.f32 %v509, %v520
        %525 = vrot.lane.b32.xlu0 %v412, 113
        %v526 = vpop.permute.xlu0 %525
        %527 = vrot.lane.b32.xlu0 %v413, 113
        %v528 = vpop.permute.xlu0 %527
        %vm529 = vcmp.lt.s32.totalorder %v419, 113
        %v530 = vsel %vm529, %v526, %v528
        %v531 = vsel %vm529, %v528, %v526
        %s532 = scalar_lea.vmem %s7, 6
        %v533 = vld [vmem:[%s532] ss:$8 sm:$0x3]
        %v535 = vlaneseq
        %v536 = vshrl.u32 %v535, 7
        %v537 = vsub.s32 0, %v536
        %v538 = vrot.slane %v533, %v537
        %v539 = vlaneseq
        %v540 = vshrl.u32 %v539, 7
        %v541 = vsub.s32 1, %v540
        %v542 = vrot.slane %v533, %v541
        %v545 = vmul.f32 %v530, %v538
        %v546 = vmul.f32 %v531, %v542
        %547 = vrot.lane.b32.xlu0 %v412, 112
        %v548 = vpop.permute.xlu0 %547
        %549 = vrot.lane.b32.xlu0 %v413, 112
        %v550 = vpop.permute.xlu0 %549
        %vm551 = vcmp.lt.s32.totalorder %v419, 112
        %v552 = vsel %vm551, %v548, %v550
        %v553 = vsel %vm551, %v550, %v548
        %s554 = scalar_lea.vmem %s7, 7
        %v555 = vld [vmem:[%s554] ss:$8 sm:$0x3]
        %v557 = vlaneseq
        %v558 = vshrl.u32 %v557, 7
        %v559 = vsub.s32 0, %v558
        %v560 = vrot.slane %v555, %v559
        %v561 = vlaneseq
        %v562 = vshrl.u32 %v561, 7
        %v563 = vsub.s32 1, %v562
        %v564 = vrot.slane %v555, %v563
        %v567 = vmul.f32 %v552, %v560
        %v568 = vmul.f32 %v553, %v564
        %569 = vrot.lane.b32.xlu0 %v412, 111
        %v570 = vpop.permute.xlu0 %569
        %571 = vrot.lane.b32.xlu0 %v413, 111
        %v572 = vpop.permute.xlu0 %571
        %vm573 = vcmp.lt.s32.totalorder %v419, 111
        %v574 = vsel %vm573, %v570, %v572
        %v575 = vsel %vm573, %v572, %v570
        %s576 = scalar_lea.vmem %s7, 16
        %v577 = vld [vmem:[%s576] ss:$8 sm:$0x3]
        %v579 = vlaneseq
        %v580 = vshrl.u32 %v579, 7
        %v581 = vsub.s32 0, %v580
        %v582 = vrot.slane %v577, %v581
        %v583 = vlaneseq
        %v584 = vshrl.u32 %v583, 7
        %v585 = vsub.s32 1, %v584
        %v586 = vrot.slane %v577, %v585
        %v589 = vmul.f32 %v574, %v582
        %v590 = vmul.f32 %v575, %v586
        %v591 = vld [vmem:[%s3] sm:$0xff]
        %v592 = vld [vmem:[%s4] sm:$0xff]
        %594 = vset.pattern.permute.xlu0 0
        %595 = vperm.xlu0 %594, %v592
        %v596 = vpop.permute.xlu0 %595
        %vm598 = vcmask 588800
        %v600 = vsel %vm598, %v591, 0
        %602 = vmatprep.subr.mxu0 %v436
        %603 = vmatpush1.msra.mxu0 %v435
        %604 = vmatprep.subr.mxu0 %v458
        %605 = vmatpush1.msra.mxu0 %v457
        %606 = vmatprep.subr.mxu0 %v480
        %607 = vmatpush1.msra.mxu0 %v479
        %608 = vmatprep.subr.mxu0 %v502
        %609 = vmatpush1.msra.mxu0 %v501
        %610 = vmatprep.subr.mxu0 %v413
        %611 = vmatpush1.msra.mxu0 %v412
        %612 = vmatprep.subr.mxu0 %v524
        %613 = vmatpush1.msra.mxu0 %v523
        %614 = vmatprep.subr.mxu0 %v546
        %615 = vmatpush1.msra.mxu0 %v545
        %616 = vmatprep.subr.mxu0 %v568
        %617 = vmatpush1.msra.mxu0 %v567
        %618 = vmatprep.subr.mxu0 %v590
        %619 = vmatpush1.msra.mxu0 %v589
        %620 = vmatprep.subr.mxu0 0.0
        %621 = vmatpush1.msra.mxu0 0.0
        %622 = vmatprep.subr.mxu0 0.0
        %623 = vmatpush1.msra.mxu0 0.0
        %624 = vmatprep.subr.mxu0 0.0
        %625 = vmatpush1.msra.mxu0 0.0
        %626 = vmatprep.subr.mxu0 0.0
        %627 = vmatpush1.msra.mxu0 0.0
        %628 = vmatprep.subr.mxu0 0.0
        %629 = vmatpush1.msra.mxu0 0.0
        %630 = vmatprep.subr.mxu0 0.0
        %631 = vmatpush1.msra.mxu0 0.0
        %632 = vmatprep.subr.mxu0 0.0
        %633 = vmatpush1.msra.mxu0 0.0
        %634 = vmatprep.subr.mxu0 0.0
        %635 = vmatpush1.msra.mxu0 0.0
        %636 = vmatprep.subr.mxu0 0.0
        %637 = vmatpush1.msra.mxu0 0.0
        %638 = vmatprep.subr.mxu0 0.0
        %639 = vmatpush1.msra.mxu0 0.0
        %640 = vmatprep.subr.mxu0 0.0
        %641 = vmatpush1.msra.mxu0 0.0
        %642 = vmatprep.subr.mxu0 0.0
        %643 = vmatpush1.msra.mxu0 0.0
        %644 = vmatprep.subr.mxu0 0.0
        %645 = vmatpush1.msra.mxu0 0.0
        %646 = vmatprep.subr.mxu0 0.0
        %647 = vmatpush1.msra.mxu0 0.0
        %648 = vmatprep.subr.mxu0 0.0
        %649 = vmatpush1.msra.mxu0 0.0
        %650 = vmatprep.subr.mxu0 0.0
        %651 = vmatpush1.msra.mxu0 0.0
        %652 = vmatprep.subr.mxu0 0.0
        %653 = vmatpush1.msra.mxu0 0.0
        %654 = vmatprep.subr.mxu0 0.0
        %655 = vmatpush1.msra.mxu0 0.0
        %656 = vmatprep.subr.mxu0 0.0
        %657 = vmatpush1.msra.mxu0 0.0
        %658 = vmatprep.subr.mxu0 0.0
        %659 = vmatpush1.msra.mxu0 0.0
        %660 = vmatprep.subr.mxu0 0.0
        %661 = vmatpush1.msra.mxu0 0.0
        %662 = vmatprep.subr.mxu0 0.0
        %663 = vmatpush1.msra.mxu0 0.0
        %664 = vmatprep.subr.mxu0 0.0
        %665 = vmatpush1.msra.mxu0 0.0
        %666 = vmatprep.mubr.f32.mxu0 0.0
        %667 = vmatmul.mubr.f32.gmra.mrb[0].mxu0 %v600
        %v668 = vpop.f32.mrb[0].mxu0
        %v669 = vadd.f32 %v596, %v668
        %v670 = vpop.f32.mrb[0].mxu0
        %v671 = vadd.f32 %v596, %v670
        %672 = vdwg.mxu0
        %v673 = vmax.f32 %v669, 0.0
        %v674 = vmax.f32 %v671, 0.0
        %v675 = vld [vmem:[%s5] sm:$0xff]
        %v676 = vld [vmem:[%s5 + $0x8] sm:$0xff]
        %v677 = vld [vmem:[%s6] sm:$0xff]
        %v678 = vld [vmem:[%s6 + $0x8] sm:$0xff]
        %680 = vset.pattern.permute.xlu0 0
        %681 = vperm.xlu0 %680, %v677
        %v682 = vpop.permute.xlu0 %681
        %685 = vset.pattern.permute.xlu0 0
        %686 = vperm.xlu0 %685, %v678
        %v687 = vpop.permute.xlu0 %686
        %vm689 = vcmask 64512
        %v691 = vsel %vm689, %v675, 0
        %v694 = vsel %vm689, %v676, 0
        %696 = vmatprep.subr.mxu0 %v674
        %697 = vmatpush1.msra.mxu0 %v673
        %698 = vmatprep.subr.mxu0 0.0
        %699 = vmatpush1.msra.mxu0 0.0
        %700 = vmatprep.subr.mxu0 0.0
        %701 = vmatpush1.msra.mxu0 0.0
        %702 = vmatprep.subr.mxu0 0.0
        %703 = vmatpush1.msra.mxu0 0.0
        %704 = vmatprep.subr.mxu0 0.0
        %705 = vmatpush1.msra.mxu0 0.0
        %706 = vmatprep.subr.mxu0 0.0
        %707 = vmatpush1.msra.mxu0 0.0
        %708 = vmatprep.subr.mxu0 0.0
        %709 = vmatpush1.msra.mxu0 0.0
        %710 = vmatprep.subr.mxu0 0.0
        %711 = vmatpush1.msra.mxu0 0.0
        %712 = vmatprep.subr.mxu0 0.0
        %713 = vmatpush1.msra.mxu0 0.0
        %714 = vmatprep.subr.mxu0 0.0
        %715 = vmatpush1.msra.mxu0 0.0
        %716 = vmatprep.subr.mxu0 0.0
        %717 = vmatpush1.msra.mxu0 0.0
        %718 = vmatprep.subr.mxu0 0.0
        %719 = vmatpush1.msra.mxu0 0.0
        %720 = vmatprep.subr.mxu0 0.0
        %721 = vmatpush1.msra.mxu0 0.0
        %722 = vmatprep.subr.mxu0 0.0
        %723 = vmatpush1.msra.mxu0 0.0
        %724 = vmatprep.subr.mxu0 0.0
        %725 = vmatpush1.msra.mxu0 0.0
        %726 = vmatprep.subr.mxu0 0.0
        %727 = vmatpush1.msra.mxu0 0.0
        %728 = vmatprep.subr.mxu0 0.0
        %729 = vmatpush1.msra.mxu0 0.0
        %730 = vmatprep.subr.mxu0 0.0
        %731 = vmatpush1.msra.mxu0 0.0
        %732 = vmatprep.subr.mxu0 0.0
        %733 = vmatpush1.msra.mxu0 0.0
        %734 = vmatprep.subr.mxu0 0.0
        %735 = vmatpush1.msra.mxu0 0.0
        %736 = vmatprep.subr.mxu0 0.0
        %737 = vmatpush1.msra.mxu0 0.0
        %738 = vmatprep.subr.mxu0 0.0
        %739 = vmatpush1.msra.mxu0 0.0
        %740 = vmatprep.subr.mxu0 0.0
        %741 = vmatpush1.msra.mxu0 0.0
        %742 = vmatprep.subr.mxu0 0.0
        %743 = vmatpush1.msra.mxu0 0.0
        %744 = vmatprep.subr.mxu0 0.0
        %745 = vmatpush1.msra.mxu0 0.0
        %746 = vmatprep.subr.mxu0 0.0
        %747 = vmatpush1.msra.mxu0 0.0
        %748 = vmatprep.subr.mxu0 0.0
        %749 = vmatpush1.msra.mxu0 0.0
        %750 = vmatprep.subr.mxu0 0.0
        %751 = vmatpush1.msra.mxu0 0.0
        %752 = vmatprep.subr.mxu0 0.0
        %753 = vmatpush1.msra.mxu0 0.0
        %754 = vmatprep.subr.mxu0 0.0
        %755 = vmatpush1.msra.mxu0 0.0
        %756 = vmatprep.subr.mxu0 0.0
        %757 = vmatpush1.msra.mxu0 0.0
        %758 = vmatprep.subr.mxu0 0.0
        %759 = vmatpush1.msra.mxu0 0.0
        %760 = vmatprep.mubr.f32.mxu0 0.0
        %761 = vmatmul.mubr.f32.gmra.mrb[0].mxu0 %v691
        %v762 = vpop.f32.mrb[0].mxu0
        %v763 = vadd.f32 %v682, %v762
        %v764 = vpop.f32.mrb[0].mxu0
        %v765 = vadd.f32 %v682, %v764
        %766 = vmatprep.mubr.f32.mxu0 0.0
        %767 = vmatmul.mubr.f32.gmra.mrb[0].mxu0 %v694
        %v768 = vpop.f32.mrb[0].mxu0
        %v769 = vadd.f32 %v687, %v768
        %v770 = vpop.f32.mrb[0].mxu0
        %v771 = vadd.f32 %v687, %v770
        %772 = vdwg.mxu0
        %v773 = vadd.f32 %v763, %v326
        %v774 = vadd.f32 %v765, %v327
        %v775 = vadd.f32 %v769, %v328
        %v776 = vadd.f32 %v771, %v329
        %v777 = vmax.f32 %v773, 0.0
        %v778 = vmax.f32 %v774, 0.0
        %v779 = vmax.f32 %v775, 0.0
        %v780 = vmax.f32 %v776, 0.0
        %781 = vst [vmem:[%s323] sm:$0xff] %v777
        %782 = vst [vmem:[%s323 + $0x8] sm:$0xff] %v778
        %783 = vst [vmem:[%s323 + $0x10] sm:$0xff] %v779
        %784 = vst [vmem:[%s323 + $0x18] sm:$0xff] %v780
        %s785 = sand.u32 %s206, 1
        %s786 = scalar_lea.sflag [#allocation4], %s785
        %s787 = sand.u32 %s206, 1
        %s788 = smul.addr %s787, 32
        %s789 = scalar_lea.vmem [#allocation5], %s788
        // Predicated region
        $region57: #{tpu_custom_call.1} parent=51 // pred_check
          %p790 = pneg %p216
        $region58: #{tpu_custom_call.1} parent=51 // pred_check_branch
          %792 = sbr.rel (%p790) target = $region60
        $region59: #{tpu_custom_call.1} parent=51 // pred_region
          %s793 = smul.u32 2, %s25
          %s795 = ssub.s32 512, 512
          %796 = vsyncadd %s786, %s795
          %s797 = smul.addr %s793, 128
          %s798 = scalar_lea.hbm %s8, %s797
          %s799 = sshll.u32 %s789, 4
          %s800 = int_to_ptr.vmem [resolvable:$true] %s799
          %805 = dma.vmem_to_hbm [thread:$0]  %s800, 512, %s798, %s786, 256, 512, 16
        $region60: #{tpu_custom_call.1} parent=51 // pred_fallthru
          _
      $region52: #{tpu_custom_call.1} parent=5 // pred_fallthru
        _
      %p806 = scmp.le.s32.totalorder 2, %s20
      // Predicated region
      $region61: #{tpu_custom_call.1} parent=5 // pred_check
        %p807 = pneg %p806
      $region62: #{tpu_custom_call.1} parent=5 // pred_check_branch
        %809 = sbr.rel (%p807) target = $region64
      $region63: #{tpu_custom_call.1} parent=5 // pred_region
        %s810 = ssub.s32 %s20, 2
        // Predicated region
        $region65: #{tpu_custom_call.1} parent=63 // pred_check
          %p811 = pneg %p222
        $region66: #{tpu_custom_call.1} parent=63 // pred_check_branch
          %813 = sbr.rel (%p811) target = $region68
        $region67: #{tpu_custom_call.1} parent=63 // pred_region
          %s814 = sand.u32 %s207, 1
          %s815 = scalar_lea.sflag [#allocation4], %s814
          %s816 = sand.u32 %s207, 1
          %s817 = smul.addr %s816, 32
          %s818 = scalar_lea.vmem [#allocation5], %s817
          %819 = dma.done %s815, 512
        $region68: #{tpu_custom_call.1} parent=63 // pred_fallthru
          _
      $region64: #{tpu_custom_call.1} parent=5 // pred_fallthru
        _
    $region6: #{tpu_custom_call.1} parent=1 // loop_footer
      %s24 = sadd.s32 1, %s20
    $region7: #{tpu_custom_call.1} parent=1 // loop_footer_branch
      %19 = sbr.rel target = $region3
    $region8: #{tpu_custom_call.1} parent=1 // loop_exit
      _
    %820 = vsyncpa [#allocation3], 1
    %s821 = scalar_lea.sflag [#allocation3], 1
    %822 = vsyncpa %s821, 1
    %823 = vsyncpa [#allocation4], 1
    %s824 = scalar_lea.sflag [#allocation4], 1
    %825 = vsyncpa %s824, 1

</llo_original>
